<compile_context>
chip_gen: v6e
topology: v6e:2x2x1
jax: 0.10.0
libtpu: 0.0.40
codegen_flags: <defaults>
</compile_context>

<pallas_src>
import functools

import jax
import jax.numpy as jnp
from jax import lax
from jax.experimental import pallas as pl
from jax.experimental.pallas import tpu as pltpu

LANE = 128
_SUBLANE = 8
# Accumulator lane assignments (raw sums).
_SUM_SQ, _SUM_BCE, _SUM_UNC, _SUM_DT2, _SUM_SG = range(5)


def _mrms_loss_kernel(mu_ref, sg_ref, tr_ref, to_ref, pm_ref, out_ref, acc_ref,
                      *, batch, tile_b, steps, has_prev, needs_mask_branch):
    c = pl.program_id(0)          # TensorCore-split ("parallel") axis
    i = pl.program_id(1)          # batch-streaming ("arbitrary") axis

    @pl.when(i == 0)
    def _init():
        acc_ref[...] = jnp.zeros_like(acc_ref)

    # Logical (unclamped) first batch row of this tile.  Fully out-of-range
    # tiles (duplicated trailing block when the core split does not divide
    # the tile count) get an all-false row mask and contribute zero.
    start = (c * steps + i) * tile_b

    mu = mu_ref[...]              # (tile_b, 8)
    sg = sg_ref[...]              # (tile_b, 8)
    tr = tr_ref[...]              # (tile_b, 4)
    to = to_ref[...]              # (tile_b, 3)

    def tile_partial_sums(mask_rows):
        mu_r = mu[:, 0:4]
        mu_o = mu[:, 4:7]
        sg_r = sg[:, 0:4]

        # 1) risk MSE numerator
        diff_r = mu_r - tr
        sq_r = diff_r * diff_r
        # 2) BCE-with-logits numerator (stable form)
        bce = (jnp.maximum(mu_o, 0.0) - mu_o * to
               + jnp.log(1.0 + jnp.exp(-jnp.abs(mu_o))))
        # 3) uncertainty calibration numerator
        unc = sq_r / (sg_r * sg_r + 1e-6) + jnp.log(sg_r + 1e-6)
        # 4) temporal consistency numerators
        if has_prev:
            dpm = mu - pm_ref[...]
            dt2 = dpm * dpm
            sgs = sg
        else:
            dt2 = None
            sgs = None

        if mask_rows:
            # Row-validity masks (select AFTER compute: garbage in padded /
            # out-of-range rows, incl. NaN/Inf, never reaches the sums).
            row4 = lax.broadcasted_iota(jnp.int32, (tile_b, 4), 0) + start
            row3 = lax.broadcasted_iota(jnp.int32, (tile_b, 3), 0) + start
            sq_r = jnp.where(row4 < batch, sq_r, 0.0)
            unc = jnp.where(row4 < batch, unc, 0.0)
            bce = jnp.where(row3 < batch, bce, 0.0)
            if has_prev:
                row8 = lax.broadcasted_iota(jnp.int32, (tile_b, 8), 0) + start
                dt2 = jnp.where(row8 < batch, dt2, 0.0)
                sgs = jnp.where(row8 < batch, sgs, 0.0)

        sums = [jnp.sum(sq_r), jnp.sum(bce), jnp.sum(unc)]
        if has_prev:
            sums += [jnp.sum(dt2), jnp.sum(sgs)]

        # Pack partial sums into lanes 0..4 of a single (1, 128) vreg.
        lane = lax.broadcasted_iota(jnp.int32, (1, LANE), 1)
        packed = jnp.zeros((1, LANE), jnp.float32)
        for k, v in enumerate(sums):
            packed = jnp.where(lane == k, v, packed)
        return packed

    if needs_mask_branch:
        full_tile = start + tile_b <= batch

        @pl.when(full_tile)
        def _fast():                       # interior tiles: no masking
            acc_ref[...] += tile_partial_sums(mask_rows=False)

        @pl.when(jnp.logical_not(full_tile))
        def _masked():                     # boundary / duplicated tiles
            acc_ref[...] += tile_partial_sums(mask_rows=True)
    else:
        acc_ref[...] += tile_partial_sums(mask_rows=False)

    @pl.when(i == steps - 1)
    def _writeout():
        out_ref[...] = acc_ref[...]


@functools.partial(
    jax.jit, static_argnames=("weights", "tile_rows", "core_split_min_tiles"))
def _loss_impl(mu_risk, sigma_risk, target_risk, target_outcome, previous_mu,
               weights, tile_rows, core_split_min_tiles):
    w_risk, w_outcome, w_uncertainty, w_temporal = weights
    has_prev = previous_mu is not None      # pytree-structural -> static
    batch = mu_risk.shape[0]

    f32 = jnp.float32
    mu_risk = mu_risk.astype(f32)
    sigma_risk = sigma_risk.astype(f32)
    target_risk = target_risk.astype(f32)
    target_outcome = target_outcome.astype(f32)
    if has_prev:
        previous_mu = previous_mu.astype(f32)

    # --- tiling ---------------------------------------------------------
    tile_rows = max(_SUBLANE, (int(tile_rows) // _SUBLANE) * _SUBLANE)
    if batch <= tile_rows:
        tile_b = batch            # one tile == full batch extent (always legal)
    else:
        tile_b = tile_rows        # multiple of 8; last tile row-masked
    num_tiles = pl.cdiv(batch, tile_b)
    # Optional 2-way TensorCore split (v7x has 2 TCs); pure overhead at small
    # batch so it is gated on the tile count.
    ncores = 2 if num_tiles >= core_split_min_tiles else 1
    steps = pl.cdiv(num_tiles, ncores)
    # Does any tile need a row-validity mask?
    needs_mask_branch = (batch % tile_b != 0) or (ncores * steps != num_tiles)

    last_tile = num_tiles - 1

    def row_map(c, i):
        # Clamp duplicated trailing blocks onto the last real block; the
        # kernel masks their contribution to zero.
        return (jnp.minimum(c * steps + i, last_tile), 0)

    kernel = functools.partial(
        _mrms_loss_kernel, batch=batch, tile_b=tile_b, steps=steps,
        has_prev=has_prev, needs_mask_branch=needs_mask_branch)
    if not has_prev:
        full_kernel = kernel
        kernel = lambda mu, sg, tr, to, out, acc: full_kernel(
            mu, sg, tr, to, None, out, acc)

    in_specs = [
        pl.BlockSpec((tile_b, 8), row_map),   # mu_risk
        pl.BlockSpec((tile_b, 8), row_map),   # sigma_risk
        pl.BlockSpec((tile_b, 4), row_map),   # target_risk
        pl.BlockSpec((tile_b, 3), row_map),   # target_outcome
    ]
    args = [mu_risk, sigma_risk, target_risk, target_outcome]
    if has_prev:
        in_specs.append(pl.BlockSpec((tile_b, 8), row_map))
        args.append(previous_mu)

    core_partials = pl.pallas_call(
        kernel,
        out_shape=jax.ShapeDtypeStruct((ncores, LANE), jnp.float32),
        grid=(ncores, steps),
        in_specs=in_specs,
        out_specs=pl.BlockSpec((1, LANE), lambda c, i: (c, 0)),
        scratch_shapes=[pltpu.VMEM((1, LANE), jnp.float32)],
        compiler_params=pltpu.CompilerParams(
            dimension_semantics=("parallel", "arbitrary")),
    )(*args)

    # Combine per-core partial sums, then do the tiny finalize math as fused
    # scalar XLA ops inside the same jit.
    sums = jnp.sum(core_partials, axis=0)     # (128,)
    risk = sums[_SUM_SQ] / (4.0 * batch)
    outcome = sums[_SUM_BCE] / (3.0 * batch)
    uncertainty = sums[_SUM_UNC] / (4.0 * batch)
    if has_prev:
        temporal = (sums[_SUM_DT2] / (8.0 * batch)) * jnp.exp(
            -sums[_SUM_SG] / (8.0 * batch))
    else:
        temporal = jnp.asarray(0.0, jnp.float32)
    total = (w_risk * risk + w_outcome * outcome
             + w_uncertainty * uncertainty + w_temporal * temporal)
    return {'risk': risk, 'outcome': outcome, 'uncertainty': uncertainty,
            'temporal': temporal, 'total': total}


def mrms_communication_loss(mu_risk, sigma_risk, target_risk, target_outcome,
                            previous_mu=None, config=None, *,
                            tile_rows=8192, core_split_min_tiles=8):
    config = dict(config or {})
    weights = (float(config.get('weight_risk', 0.3)),
               float(config.get('weight_outcome', 0.3)),
               float(config.get('weight_uncertainty', 0.2)),
               float(config.get('weight_temporal', 0.2)))
    if mu_risk.shape[0] == 0:
        raise ValueError("MRMSCommunicationLoss: batch must be non-empty")
    return _loss_impl(mu_risk, sigma_risk, target_risk, target_outcome,
                      previous_mu, weights, int(tile_rows),
                      int(core_split_min_tiles))


def _reference_loss(mu_risk, sigma_risk, target_risk, target_outcome,
                    previous_mu, w=(0.3, 0.3, 0.2, 0.2)):
    """Pure-JAX reference matching the PyTorch module exactly."""
    risk_pred = mu_risk[:, :4]
    risk = jnp.mean((risk_pred - target_risk) ** 2)
    x = mu_risk[:, 4:7]
    z = target_outcome
    outcome = jnp.mean(jnp.maximum(x, 0.0) - x * z
                       + jnp.log1p(jnp.exp(-jnp.abs(x))))
    risk_error = (risk_pred - target_risk) ** 2
    sp = sigma_risk[:, :4]
    uncertainty = jnp.mean(risk_error / (sp ** 2 + 1e-6) + jnp.log(sp + 1e-6))
    if previous_mu is not None:
        temporal = jnp.mean((mu_risk - previous_mu) ** 2) * jnp.exp(
            -jnp.mean(sigma_risk))
    else:
        temporal = jnp.float32(0.0)
    total = (w[0] * risk + w[1] * outcome + w[2] * uncertainty
             + w[3] * temporal)
    return {'risk': risk, 'outcome': outcome, 'uncertainty': uncertainty,
            'temporal': temporal, 'total': total}


if __name__ == "__main__":
    key = jax.random.PRNGKey(0)
    k1, k2, k3, k4, k5 = jax.random.split(key, 5)

    def make_inputs(batch):
        mu = jax.random.normal(k1, (batch, 8), jnp.float32)
        sg = jax.nn.softplus(jax.random.normal(k2, (batch, 8), jnp.float32)) + 0.1
        tr = jax.random.normal(k3, (batch, 4), jnp.float32)
        to = jax.random.uniform(k4, (batch, 3), jnp.float32)
        pm = jax.random.normal(k5, (batch, 8), jnp.float32)
        return mu, sg, tr, to, pm

    names = ('risk', 'outcome', 'uncertainty', 'temporal', 'total')

    # 1) small batch, with previous_mu (single-tile, unmasked fast path).
    mu, sg, tr, to, pm = make_inputs(8)
    got = mrms_communication_loss(mu, sg, tr, to, pm)
    got = {k: jax.block_until_ready(v) for k, v in got.items()}
    ref = _reference_loss(mu, sg, tr, to, pm)
    for n in names:
        assert jnp.allclose(got[n], ref[n], atol=1e-4, rtol=1e-4), (n, got[n], ref[n])

    # 2) previous_mu=None branch (temporal is exactly zero, no prev DMA).
    got_np = mrms_communication_loss(mu, sg, tr, to, None)
    got_np = {k: jax.block_until_ready(v) for k, v in got_np.items()}
    ref_np = _reference_loss(mu, sg, tr, to, None)
    assert jnp.allclose(got_np['temporal'], 0.0)
    for n in ('risk', 'outcome', 'uncertainty', 'total'):
        assert jnp.allclose(got_np[n], ref_np[n], atol=1e-4, rtol=1e-4), (
            n, got_np[n], ref_np[n])

    # 3) multi-tile streaming path: partial last tile (row masking), 2-way
    #    core split with a clamped duplicated tile — forced at small shapes
    #    via the tiling knobs.
    mu, sg, tr, to, pm = make_inputs(37)
    got_mt = mrms_communication_loss(mu, sg, tr, to, pm,
                                     tile_rows=16, core_split_min_tiles=2)
    got_mt = {k: jax.block_until_ready(v) for k, v in got_mt.items()}
    ref_mt = _reference_loss(mu, sg, tr, to, pm)
    for n in names:
        assert jnp.allclose(got_mt[n], ref_mt[n], atol=1e-4, rtol=1e-4), (
            n, got_mt[n], ref_mt[n])

    print("KERNEL_OK")
</pallas_src>

<mosaic_0001>
module attributes {stable_mosaic.version = 11 : i64} {
  func.func @_mrms_loss_kernel(%arg0: i32, %arg1: i32, %arg2: memref<8x8xf32, #tpu.memory_space<vmem>>, %arg3: memref<8x8xf32, #tpu.memory_space<vmem>>, %arg4: memref<8x4xf32, #tpu.memory_space<vmem>>, %arg5: memref<8x3xf32, #tpu.memory_space<vmem>>, %arg6: memref<8x8xf32, #tpu.memory_space<vmem>>, %arg7: memref<1x128xf32, #tpu.memory_space<vmem>>, %arg8: memref<1x128xf32, #tpu.memory_space<vmem>>) attributes {dimension_semantics = [#tpu.dimension_semantics<parallel>, #tpu.dimension_semantics<arbitrary>], iteration_bounds = array<i64: 1, 1>, scalar_prefetch = 0 : i64, scratch_operands = 1 : i64, tpu.core_type = #tpu.core_type<tc>, window_params = [{transform_indices = @transform_0, window_bounds = array<i64: 8, 8>}, {transform_indices = @transform_1, window_bounds = array<i64: 8, 8>}, {transform_indices = @transform_2, window_bounds = array<i64: 8, 4>}, {transform_indices = @transform_3, window_bounds = array<i64: 8, 3>}, {transform_indices = @transform_4, window_bounds = array<i64: 8, 8>}, {transform_indices = @transform_5, window_bounds = array<i64: 1, 128>}]} {
    %c0_i32 = arith.constant 0 : i32
    %0 = arith.cmpi eq, %arg1, %c0_i32 : i32
    %1 = arith.extui %0 : i1 to i32
    %c0_i32_0 = arith.constant 0 : i32
    %2 = arith.cmpi ne, %1, %c0_i32_0 : i32
    scf.if %2 {
      %cst_27 = arith.constant 0.000000e+00 : f32
      %83 = vector.broadcast %cst_27 : f32 to vector<1x128xf32>
      %c0_28 = arith.constant 0 : index
      %c0_29 = arith.constant 0 : index
      %84 = vector.load %arg8[%c0_28, %c0_29] : memref<1x128xf32, #tpu.memory_space<vmem>>, vector<1x128xf32>
      tpu.vector_store %arg8[%c0_28, %c0_29], %83 {strides = array<i32>} : memref<1x128xf32, #tpu.memory_space<vmem>>, vector<1x128xf32>,
    } else {
    }
    %c0 = arith.constant 0 : index
    %c0_1 = arith.constant 0 : index
    %3 = vector.load %arg2[%c0, %c0_1] : memref<8x8xf32, #tpu.memory_space<vmem>>, vector<8x8xf32>
    %c0_2 = arith.constant 0 : index
    %c0_3 = arith.constant 0 : index
    %4 = vector.load %arg3[%c0_2, %c0_3] : memref<8x8xf32, #tpu.memory_space<vmem>>, vector<8x8xf32>
    %c0_4 = arith.constant 0 : index
    %c0_5 = arith.constant 0 : index
    %5 = vector.load %arg4[%c0_4, %c0_5] : memref<8x4xf32, #tpu.memory_space<vmem>>, vector<8x4xf32>
    %c0_6 = arith.constant 0 : index
    %c0_7 = arith.constant 0 : index
    %6 = vector.load %arg5[%c0_6, %c0_7] : memref<8x3xf32, #tpu.memory_space<vmem>>, vector<8x3xf32>
    %c0_8 = arith.constant 0 : index
    %c0_9 = arith.constant 0 : index
    %7 = vector.load %arg8[%c0_8, %c0_9] : memref<1x128xf32, #tpu.memory_space<vmem>>, vector<1x128xf32>
    %8 = vector.extract_strided_slice %3 {offsets = [0, 0], sizes = [8, 4], strides = [1, 1]} : vector<8x8xf32> to vector<8x4xf32>
    %9 = vector.extract_strided_slice %3 {offsets = [0, 4], sizes = [8, 3], strides = [1, 1]} : vector<8x8xf32> to vector<8x3xf32>
    %10 = vector.extract_strided_slice %4 {offsets = [0, 0], sizes = [8, 4], strides = [1, 1]} : vector<8x8xf32> to vector<8x4xf32>
    %11 = arith.subf %8, %5 : vector<8x4xf32>
    %12 = arith.mulf %11, %11 : vector<8x4xf32>
    %cst = arith.constant 0.000000e+00 : f32
    %13 = vector.broadcast %cst : f32 to vector<8x3xf32>
    %14 = arith.maximumf %9, %13 : vector<8x3xf32>
    %15 = arith.mulf %9, %6 : vector<8x3xf32>
    %16 = arith.subf %14, %15 : vector<8x3xf32>
    %17 = math.absf %9 : vector<8x3xf32>
    %cst_10 = arith.constant 0.000000e+00 : f32
    %18 = vector.broadcast %cst_10 : f32 to vector<8x3xf32>
    %19 = arith.subf %18, %17 : vector<8x3xf32>
    %20 = math.exp %19 : vector<8x3xf32>
    %cst_11 = arith.constant 1.000000e+00 : f32
    %21 = vector.broadcast %cst_11 : f32 to vector<8x3xf32>
    %22 = arith.addf %21, %20 : vector<8x3xf32>
    %23 = math.log %22 : vector<8x3xf32>
    %24 = arith.addf %16, %23 : vector<8x3xf32>
    %25 = arith.mulf %10, %10 : vector<8x4xf32>
    %cst_12 = arith.constant 9.99999997E-7 : f32
    %26 = vector.broadcast %cst_12 : f32 to vector<8x4xf32>
    %27 = arith.addf %25, %26 : vector<8x4xf32>
    %28 = arith.divf %12, %27 : vector<8x4xf32>
    %cst_13 = arith.constant 9.99999997E-7 : f32
    %29 = vector.broadcast %cst_13 : f32 to vector<8x4xf32>
    %30 = arith.addf %10, %29 : vector<8x4xf32>
    %31 = math.log %30 : vector<8x4xf32>
    %32 = arith.addf %28, %31 : vector<8x4xf32>
    %c0_14 = arith.constant 0 : index
    %c0_15 = arith.constant 0 : index
    %33 = vector.load %arg6[%c0_14, %c0_15] : memref<8x8xf32, #tpu.memory_space<vmem>>, vector<8x8xf32>
    %34 = arith.subf %3, %33 : vector<8x8xf32>
    %35 = arith.mulf %34, %34 : vector<8x8xf32>
    %36 = vector.shape_cast %12 : vector<8x4xf32> to vector<1x8x4xf32>
    %cst_16 = arith.constant dense<0.000000e+00> : vector<1xf32>
    %37 = vector.multi_reduction <add>, %36, %cst_16 [1, 2] : vector<1x8x4xf32> to vector<1xf32>
    %38 = vector.shape_cast %37 : vector<1xf32> to vector<1x1x1xf32>
    %39 = vector.extract %38[0, 0, 0] : f32 from vector<1x1x1xf32>
    %40 = vector.shape_cast %24 : vector<8x3xf32> to vector<1x8x3xf32>
    %cst_17 = arith.constant dense<0.000000e+00> : vector<1xf32>
    %41 = vector.multi_reduction <add>, %40, %cst_17 [1, 2] : vector<1x8x3xf32> to vector<1xf32>
    %42 = vector.shape_cast %41 : vector<1xf32> to vector<1x1x1xf32>
    %43 = vector.extract %42[0, 0, 0] : f32 from vector<1x1x1xf32>
    %44 = vector.shape_cast %32 : vector<8x4xf32> to vector<1x8x4xf32>
    %cst_18 = arith.constant dense<0.000000e+00> : vector<1xf32>
    %45 = vector.multi_reduction <add>, %44, %cst_18 [1, 2] : vector<1x8x4xf32> to vector<1xf32>
    %46 = vector.shape_cast %45 : vector<1xf32> to vector<1x1x1xf32>
    %47 = vector.extract %46[0, 0, 0] : f32 from vector<1x1x1xf32>
    %48 = vector.shape_cast %35 : vector<8x8xf32> to vector<1x8x8xf32>
    %cst_19 = arith.constant dense<0.000000e+00> : vector<1xf32>
    %49 = vector.multi_reduction <add>, %48, %cst_19 [1, 2] : vector<1x8x8xf32> to vector<1xf32>
    %50 = vector.shape_cast %49 : vector<1xf32> to vector<1x1x1xf32>
    %51 = vector.extract %50[0, 0, 0] : f32 from vector<1x1x1xf32>
    %52 = vector.shape_cast %4 : vector<8x8xf32> to vector<1x8x8xf32>
    %cst_20 = arith.constant dense<0.000000e+00> : vector<1xf32>
    %53 = vector.multi_reduction <add>, %52, %cst_20 [1, 2] : vector<1x8x8xf32> to vector<1xf32>
    %54 = vector.shape_cast %53 : vector<1xf32> to vector<1x1x1xf32>
    %55 = vector.extract %54[0, 0, 0] : f32 from vector<1x1x1xf32>
    %56 = tpu.iota {dimensions = array<i32: 1>} : vector<1x128xi32>
    %cst_21 = arith.constant 0.000000e+00 : f32
    %57 = vector.broadcast %cst_21 : f32 to vector<1x128xf32>
    %c0_i32_22 = arith.constant 0 : i32
    %58 = vector.broadcast %c0_i32_22 : i32 to vector<1x128xi32>
    %59 = arith.cmpi eq, %56, %58 : vector<1x128xi32>
    %60 = vector.broadcast %39 : f32 to vector<1x128xf32>
    %61 = arith.select %59, %60, %57 : vector<1x128xi1>, vector<1x128xf32>
    %c1_i32 = arith.constant 1 : i32
    %62 = vector.broadcast %c1_i32 : i32 to vector<1x128xi32>
    %63 = arith.cmpi eq, %56, %62 : vector<1x128xi32>
    %64 = vector.broadcast %43 : f32 to vector<1x128xf32>
    %65 = arith.select %63, %64, %61 : vector<1x128xi1>, vector<1x128xf32>
    %c2_i32 = arith.constant 2 : i32
    %66 = vector.broadcast %c2_i32 : i32 to vector<1x128xi32>
    %67 = arith.cmpi eq, %56, %66 : vector<1x128xi32>
    %68 = vector.broadcast %47 : f32 to vector<1x128xf32>
    %69 = arith.select %67, %68, %65 : vector<1x128xi1>, vector<1x128xf32>
    %c3_i32 = arith.constant 3 : i32
    %70 = vector.broadcast %c3_i32 : i32 to vector<1x128xi32>
    %71 = arith.cmpi eq, %56, %70 : vector<1x128xi32>
    %72 = vector.broadcast %51 : f32 to vector<1x128xf32>
    %73 = arith.select %71, %72, %69 : vector<1x128xi1>, vector<1x128xf32>
    %c4_i32 = arith.constant 4 : i32
    %74 = vector.broadcast %c4_i32 : i32 to vector<1x128xi32>
    %75 = arith.cmpi eq, %56, %74 : vector<1x128xi32>
    %76 = vector.broadcast %55 : f32 to vector<1x128xf32>
    %77 = arith.select %75, %76, %73 : vector<1x128xi1>, vector<1x128xf32>
    %78 = arith.addf %7, %77 : vector<1x128xf32>
    %c0_23 = arith.constant 0 : index
    %c0_24 = arith.constant 0 : index
    %79 = vector.load %arg8[%c0_23, %c0_24] : memref<1x128xf32, #tpu.memory_space<vmem>>, vector<1x128xf32>
    tpu.vector_store %arg8[%c0_23, %c0_24], %78 {strides = array<i32>} : memref<1x128xf32, #tpu.memory_space<vmem>>, vector<1x128xf32>,
    %c0_i32_25 = arith.constant 0 : i32
    %80 = arith.cmpi eq, %arg1, %c0_i32_25 : i32
    %81 = arith.extui %80 : i1 to i32
    %c0_i32_26 = arith.constant 0 : i32
    %82 = arith.cmpi ne, %81, %c0_i32_26 : i32
    scf.if %82 {
      %c0_27 = arith.constant 0 : index
      %c0_28 = arith.constant 0 : index
      %83 = vector.load %arg8[%c0_27, %c0_28] : memref<1x128xf32, #tpu.memory_space<vmem>>, vector<1x128xf32>
      %c0_29 = arith.constant 0 : index
      %c0_30 = arith.constant 0 : index
      %84 = vector.load %arg7[%c0_29, %c0_30] : memref<1x128xf32, #tpu.memory_space<vmem>>, vector<1x128xf32>
      tpu.vector_store %arg7[%c0_29, %c0_30], %83 {strides = array<i32>} : memref<1x128xf32, #tpu.memory_space<vmem>>, vector<1x128xf32>,
    } else {
    }
    return
  }
  func.func @transform_0(%arg0: i32, %arg1: i32) -> (i32, i32) {
    %c1_i32 = arith.constant 1 : i32
    %0 = arith.muli %arg0, %c1_i32 : i32
    %1 = arith.addi %0, %arg1 : i32
    %c0_i32 = arith.constant 0 : i32
    %2 = arith.minsi %1, %c0_i32 : i32
    %c0_i32_0 = arith.constant 0 : i32
    %c0_i32_1 = arith.constant 0 : i32
    return %2, %c0_i32_0 : i32, i32
  }
  func.func @transform_1(%arg0: i32, %arg1: i32) -> (i32, i32) {
    %c1_i32 = arith.constant 1 : i32
    %0 = arith.muli %arg0, %c1_i32 : i32
    %1 = arith.addi %0, %arg1 : i32
    %c0_i32 = arith.constant 0 : i32
    %2 = arith.minsi %1, %c0_i32 : i32
    %c0_i32_0 = arith.constant 0 : i32
    %c0_i32_1 = arith.constant 0 : i32
    return %2, %c0_i32_0 : i32, i32
  }
  func.func @transform_2(%arg0: i32, %arg1: i32) -> (i32, i32) {
    %c1_i32 = arith.constant 1 : i32
    %0 = arith.muli %arg0, %c1_i32 : i32
    %1 = arith.addi %0, %arg1 : i32
    %c0_i32 = arith.constant 0 : i32
    %2 = arith.minsi %1, %c0_i32 : i32
    %c0_i32_0 = arith.constant 0 : i32
    %c0_i32_1 = arith.constant 0 : i32
    return %2, %c0_i32_0 : i32, i32
  }
  func.func @transform_3(%arg0: i32, %arg1: i32) -> (i32, i32) {
    %c1_i32 = arith.constant 1 : i32
    %0 = arith.muli %arg0, %c1_i32 : i32
    %1 = arith.addi %0, %arg1 : i32
    %c0_i32 = arith.constant 0 : i32
    %2 = arith.minsi %1, %c0_i32 : i32
    %c0_i32_0 = arith.constant 0 : i32
    %c0_i32_1 = arith.constant 0 : i32
    return %2, %c0_i32_0 : i32, i32
  }
  func.func @transform_4(%arg0: i32, %arg1: i32) -> (i32, i32) {
    %c1_i32 = arith.constant 1 : i32
    %0 = arith.muli %arg0, %c1_i32 : i32
    %1 = arith.addi %0, %arg1 : i32
    %c0_i32 = arith.constant 0 : i32
    %2 = arith.minsi %1, %c0_i32 : i32
    %c0_i32_0 = arith.constant 0 : i32
    %c0_i32_1 = arith.constant 0 : i32
    return %2, %c0_i32_0 : i32, i32
  }
  func.func @transform_5(%arg0: i32, %arg1: i32) -> (i32, i32) {
    %c0_i32 = arith.constant 0 : i32
    %c0_i32_0 = arith.constant 0 : i32
    return %arg0, %c0_i32 : i32, i32
  }
}

</mosaic_0001>

<llo_original>
// kernel: _loss_impl.1
$region0: #{_loss_impl.1}
  #allocation0 [shape = 'u32[]', space=smem, size = 0x4, offset = 0x4, fixed_abs, tag = 'smem constant byte address 0x4 - core index']
  #allocation1 [shape = 'u32[144,128]{1,0:T(1,128)}', space=vmem, size = 0x12000, scoped, tag = 'internal scratch']
  #allocation2 [shape = 'f32[1,128]{1,0:T(1,128)}', space=vmem, size = 0x200, scoped, tag = 'scratch operand']
  %s0 = inlined_call_operand.vmem [shape: f32[8,8], index: 0, kind: input, shape index: {}]
  %s1 = inlined_call_operand.vmem [shape: f32[8,8], index: 1, kind: input, shape index: {}]
  %s2 = inlined_call_operand.vmem [shape: f32[8,4], index: 2, kind: input, shape index: {}]
  %s3 = inlined_call_operand.vmem [shape: f32[8,3], index: 3, kind: input, shape index: {}]
  %s4 = inlined_call_operand.vmem [shape: f32[8,8], index: 4, kind: input, shape index: {}]
  %s5 = inlined_call_operand.vmem [shape: f32[1,128], index: 5, kind: output, shape index: {}]
  %s6 = sld [smem:[#allocation0]]
  $region38: #{_loss_impl.1} parent=0
    _
  %s8 = ssub.s32 1, %s6
  %s9 = scalar_select 0, %s8, %s6
  // Predicated region
  $region2: #{_loss_impl.1} parent=0 // pred_check
    _
  $region3: #{_loss_impl.1} parent=0 // pred_check_branch
    %11 = sbr.rel (0) target = $region5
  $region4: #{_loss_impl.1} parent=0 // pred_region
    %s12 = sadd.s32 0, 0
    %p13 = scmp.lt.s32.totalorder %s12, 0
    %s14 = scalar_select %p13, %s12, 0
    %p15 = scmp.lt.s32.totalorder %s14, 0
    %s16 = scalar_select %p15, %s14, 0
    %s17 = smul.addr %s16, 8
    %s18 = scalar_lea.vmem %s0, %s17
    %s19 = sadd.s32 0, 0
    %p20 = scmp.lt.s32.totalorder %s19, 0
    %s21 = scalar_select %p20, %s19, 0
  $region5: #{_loss_impl.1} parent=0 // pred_fallthru
    _
  // Predicated region
  $region6: #{_loss_impl.1} parent=0 // pred_check
    _
  $region7: #{_loss_impl.1} parent=0 // pred_check_branch
    %23 = sbr.rel (0) target = $region9
  $region8: #{_loss_impl.1} parent=0 // pred_region
    %s24 = sadd.s32 0, 0
    %p25 = scmp.lt.s32.totalorder %s24, 0
    %s26 = scalar_select %p25, %s24, 0
    %p27 = scmp.lt.s32.totalorder %s26, 0
    %s28 = scalar_select %p27, %s26, 0
    %s29 = smul.addr %s28, 8
    %s30 = scalar_lea.vmem %s1, %s29
    %s31 = sadd.s32 0, 0
    %p32 = scmp.lt.s32.totalorder %s31, 0
    %s33 = scalar_select %p32, %s31, 0
  $region9: #{_loss_impl.1} parent=0 // pred_fallthru
    _
  // Predicated region
  $region10: #{_loss_impl.1} parent=0 // pred_check
    _
  $region11: #{_loss_impl.1} parent=0 // pred_check_branch
    %35 = sbr.rel (0) target = $region13
  $region12: #{_loss_impl.1} parent=0 // pred_region
    %s36 = sadd.s32 0, 0
    %p37 = scmp.lt.s32.totalorder %s36, 0
    %s38 = scalar_select %p37, %s36, 0
    %p39 = scmp.lt.s32.totalorder %s38, 0
    %s40 = scalar_select %p39, %s38, 0
    %s41 = smul.addr %s40, 8
    %s42 = scalar_lea.vmem %s2, %s41
    %s43 = sadd.s32 0, 0
    %p44 = scmp.lt.s32.totalorder %s43, 0
    %s45 = scalar_select %p44, %s43, 0
  $region13: #{_loss_impl.1} parent=0 // pred_fallthru
    _
  // Predicated region
  $region14: #{_loss_impl.1} parent=0 // pred_check
    _
  $region15: #{_loss_impl.1} parent=0 // pred_check_branch
    %47 = sbr.rel (0) target = $region17
  $region16: #{_loss_impl.1} parent=0 // pred_region
    %s48 = sadd.s32 0, 0
    %p49 = scmp.lt.s32.totalorder %s48, 0
    %s50 = scalar_select %p49, %s48, 0
    %p51 = scmp.lt.s32.totalorder %s50, 0
    %s52 = scalar_select %p51, %s50, 0
    %s53 = smul.addr %s52, 8
    %s54 = scalar_lea.vmem %s3, %s53
    %s55 = sadd.s32 0, 0
    %p56 = scmp.lt.s32.totalorder %s55, 0
    %s57 = scalar_select %p56, %s55, 0
  $region17: #{_loss_impl.1} parent=0 // pred_fallthru
    _
  // Predicated region
  $region18: #{_loss_impl.1} parent=0 // pred_check
    _
  $region19: #{_loss_impl.1} parent=0 // pred_check_branch
    %59 = sbr.rel (0) target = $region21
  $region20: #{_loss_impl.1} parent=0 // pred_region
    %s60 = sadd.s32 0, 0
    %p61 = scmp.lt.s32.totalorder %s60, 0
    %s62 = scalar_select %p61, %s60, 0
    %p63 = scmp.lt.s32.totalorder %s62, 0
    %s64 = scalar_select %p63, %s62, 0
    %s65 = smul.addr %s64, 8
    %s66 = scalar_lea.vmem %s4, %s65
    %s67 = sadd.s32 0, 0
    %p68 = scmp.lt.s32.totalorder %s67, 0
    %s69 = scalar_select %p68, %s67, 0
  $region21: #{_loss_impl.1} parent=0 // pred_fallthru
    _
  %s70 = sadd.s32 0, 0
  %p71 = scmp.lt.s32.totalorder %s70, 0
  %s72 = scalar_select %p71, %s70, 0
  %p73 = scmp.lt.s32.totalorder %s72, 0
  %s74 = scalar_select %p73, %s72, 0
  %s75 = smul.addr %s74, 8
  %s76 = scalar_lea.vmem %s0, %s75
  %s77 = sadd.s32 0, 0
  %p78 = scmp.lt.s32.totalorder %s77, 0
  %s79 = scalar_select %p78, %s77, 0
  %p80 = scmp.lt.s32.totalorder %s79, 0
  %s81 = scalar_select %p80, %s79, 0
  %s82 = smul.addr %s81, 8
  %s83 = scalar_lea.vmem %s1, %s82
  %s84 = sadd.s32 0, 0
  %p85 = scmp.lt.s32.totalorder %s84, 0
  %s86 = scalar_select %p85, %s84, 0
  %p87 = scmp.lt.s32.totalorder %s86, 0
  %s88 = scalar_select %p87, %s86, 0
  %s89 = smul.addr %s88, 8
  %s90 = scalar_lea.vmem %s2, %s89
  %s91 = sadd.s32 0, 0
  %p92 = scmp.lt.s32.totalorder %s91, 0
  %s93 = scalar_select %p92, %s91, 0
  %p94 = scmp.lt.s32.totalorder %s93, 0
  %s95 = scalar_select %p94, %s93, 0
  %s96 = smul.addr %s95, 8
  %s97 = scalar_lea.vmem %s3, %s96
  %s98 = sadd.s32 0, 0
  %p99 = scmp.lt.s32.totalorder %s98, 0
  %s100 = scalar_select %p99, %s98, 0
  %p101 = scmp.lt.s32.totalorder %s100, 0
  %s102 = scalar_select %p101, %s100, 0
  %s103 = smul.addr %s102, 8
  %s104 = scalar_lea.vmem %s4, %s103
  %s105 = sadd.s32 0, 0
  %p106 = scmp.lt.s32.totalorder %s105, 0
  %s107 = scalar_select %p106, %s105, 0
  %p108 = scmp.lt.s32.totalorder %s107, 0
  %s109 = scalar_select %p108, %s107, 0
  %s110 = smul.addr %s109, 8
  %s111 = scalar_lea.vmem %s0, %s110
  %s112 = sadd.s32 0, 0
  %p113 = scmp.lt.s32.totalorder %s112, 0
  %s114 = scalar_select %p113, %s112, 0
  %s115 = sadd.s32 0, 0
  %p116 = scmp.lt.s32.totalorder %s115, 0
  %s117 = scalar_select %p116, %s115, 0
  %p118 = scmp.lt.s32.totalorder %s117, 0
  %s119 = scalar_select %p118, %s117, 0
  %s120 = smul.addr %s119, 8
  %s121 = scalar_lea.vmem %s1, %s120
  %s122 = sadd.s32 0, 0
  %p123 = scmp.lt.s32.totalorder %s122, 0
  %s124 = scalar_select %p123, %s122, 0
  %s125 = sadd.s32 0, 0
  %p126 = scmp.lt.s32.totalorder %s125, 0
  %s127 = scalar_select %p126, %s125, 0
  %p128 = scmp.lt.s32.totalorder %s127, 0
  %s129 = scalar_select %p128, %s127, 0
  %s130 = smul.addr %s129, 8
  %s131 = scalar_lea.vmem %s2, %s130
  %s132 = sadd.s32 0, 0
  %p133 = scmp.lt.s32.totalorder %s132, 0
  %s134 = scalar_select %p133, %s132, 0
  %s135 = sadd.s32 0, 0
  %p136 = scmp.lt.s32.totalorder %s135, 0
  %s137 = scalar_select %p136, %s135, 0
  %p138 = scmp.lt.s32.totalorder %s137, 0
  %s139 = scalar_select %p138, %s137, 0
  %s140 = smul.addr %s139, 8
  %s141 = scalar_lea.vmem %s3, %s140
  %s142 = sadd.s32 0, 0
  %p143 = scmp.lt.s32.totalorder %s142, 0
  %s144 = scalar_select %p143, %s142, 0
  %s145 = sadd.s32 0, 0
  %p146 = scmp.lt.s32.totalorder %s145, 0
  %s147 = scalar_select %p146, %s145, 0
  %p148 = scmp.lt.s32.totalorder %s147, 0
  %s149 = scalar_select %p148, %s147, 0
  %s150 = smul.addr %s149, 8
  %s151 = scalar_lea.vmem %s4, %s150
  %s152 = sadd.s32 0, 0
  %p153 = scmp.lt.s32.totalorder %s152, 0
  %s154 = scalar_select %p153, %s152, 0
  %p155 = scmp.eq.s32.totalorder 0, 0
  // Predicated region
  $region22: #{_loss_impl.1} parent=0 // pred_check
    %p156 = pneg %p155
  $region23: #{_loss_impl.1} parent=0 // pred_check_branch
    %158 = sbr.rel (%p156) target = $region25
  $region24: #{_loss_impl.1} parent=0 // pred_region
    %159 = vst [vmem:[#allocation2] sm:$0x1] 0.0
  $region25: #{_loss_impl.1} parent=0 // pred_fallthru
    _
  %v160 = vld [vmem:[%s111] sm:$0xff]
  %v161 = vld [vmem:[%s121] sm:$0xff]
  %v162 = vld [vmem:[%s131] sm:$0xff]
  %v163 = vld [vmem:[%s141] sm:$0xff]
  %v164 = vld [vmem:[#allocation2] sm:$0x1]
  %v165 = vsub.f32 %v160, %v162
  %v166 = vmul.f32 %v165, %v165
  %v167 = vmax.f32 %v160, 0.0
  %169 = vrot.lane.b32.xlu0 %v163, 4
  %v170 = vpop.permute.xlu0 %169
  %v172 = vmul.f32 %v160, %v170
  %v173 = vsub.f32 %v167, %v172
  %v174 = vand.u32 2147483647, %v160
  %v175 = vsub.f32 0.0, %v174
  %v176 = vmul.f32 %v175, 1.442695
  %v177 = vpow.pop %v176
  %v178 = vadd.f32 %v177, 1.0
  %v179 = vlog2.pop %v178
  %v180 = vmul.f32 %v179, 0.6931472
  %v181 = vadd.f32 %v173, %v180
  %v182 = vmul.f32 %v161, %v161
  %v183 = vadd.f32 %v182, 1e-06
  %v184 = vrcp.pop %v183
  %v185 = vmul.f32 %v166, %v184
  %v186 = vadd.f32 %v161, 1e-06
  %v187 = vlog2.pop %v186
  %v188 = vmul.f32 %v187, 0.6931472
  %v189 = vadd.f32 %v185, %v188
  %v190 = vld [vmem:[%s151] sm:$0xff]
  %v191 = vsub.f32 %v160, %v190
  %v192 = vmul.f32 %v191, %v191
  %vm193 = vcmask 31744
  %v194 = vsel %vm193, %v166, 0.0
  %195 = vadd.xlane.f32.xlu0 %v194
  %v196 = vpop.xlane.xlu0 %195
  %v197 = vrot.slane %v196, 4
  %v198 = vadd.f32 %v196, %v197
  %v199 = vrot.slane %v198, 2
  %v200 = vadd.f32 %v198, %v199
  %v201 = vrot.slane %v200, 1
  %v202 = vadd.f32 %v200, %v201
  %s203 = vtos %v202
  %205 = vrot.lane.b32.xlu0 %v181, 124
  %v206 = vpop.permute.xlu0 %205
  %vm208 = vcmask 23552
  %v209 = vsel %vm208, %v206, 0.0
  %210 = vadd.xlane.f32.xlu0 %v209
  %v211 = vpop.xlane.xlu0 %210
  %v212 = vrot.slane %v211, 4
  %v213 = vadd.f32 %v211, %v212
  %v214 = vrot.slane %v213, 2
  %v215 = vadd.f32 %v213, %v214
  %v216 = vrot.slane %v215, 1
  %v217 = vadd.f32 %v215, %v216
  %s218 = vtos %v217
  %v219 = vsel %vm193, %v189, 0.0
  %220 = vadd.xlane.f32.xlu0 %v219
  %v221 = vpop.xlane.xlu0 %220
  %v222 = vrot.slane %v221, 4
  %v223 = vadd.f32 %v221, %v222
  %v224 = vrot.slane %v223, 2
  %v225 = vadd.f32 %v223, %v224
  %v226 = vrot.slane %v225, 1
  %v227 = vadd.f32 %v225, %v226
  %s228 = vtos %v227
  %vm229 = vcmask 64512
  %v230 = vsel %vm229, %v192, 0.0
  %231 = vadd.xlane.f32.xlu0 %v230
  %v232 = vpop.xlane.xlu0 %231
  %v233 = vrot.slane %v232, 4
  %v234 = vadd.f32 %v232, %v233
  %v235 = vrot.slane %v234, 2
  %v236 = vadd.f32 %v234, %v235
  %v237 = vrot.slane %v236, 1
  %v238 = vadd.f32 %v236, %v237
  %s239 = vtos %v238
  %v240 = vsel %vm229, %v161, 0.0
  %241 = vadd.xlane.f32.xlu0 %v240
  %v242 = vpop.xlane.xlu0 %241
  %v243 = vrot.slane %v242, 4
  %v244 = vadd.f32 %v242, %v243
  %v245 = vrot.slane %v244, 2
  %v246 = vadd.f32 %v244, %v245
  %v247 = vrot.slane %v246, 1
  %v248 = vadd.f32 %v246, %v247
  %s249 = vtos %v248
  %v250 = vlaneseq
  %v251 = vand.u32 %v250, 127
  %vm252 = vcmp.eq.s32.totalorder %v251, 0
  %v253 = vstv %s203
  %v254 = vsel %vm252, %v253, 0.0
  %vm255 = vcmp.eq.s32.totalorder %v251, 1
  %v256 = vstv %s218
  %v257 = vsel %vm255, %v256, %v254
  %vm258 = vcmp.eq.s32.totalorder %v251, 2
  %v259 = vstv %s228
  %v260 = vsel %vm258, %v259, %v257
  %vm261 = vcmp.eq.s32.totalorder %v251, 3
  %v262 = vstv %s239
  %v263 = vsel %vm261, %v262, %v260
  %vm264 = vcmp.eq.s32.totalorder %v251, 4
  %v265 = vstv %s249
  %v266 = vsel %vm264, %v265, %v263
  %v267 = vadd.f32 %v164, %v266
  %268 = vst [vmem:[#allocation2] sm:$0x1] %v267
  // Predicated region
  $region26: #{_loss_impl.1} parent=0 // pred_check
    %p269 = pneg %p155
  $region27: #{_loss_impl.1} parent=0 // pred_check_branch
    %271 = sbr.rel (%p269) target = $region29
  $region28: #{_loss_impl.1} parent=0 // pred_region
    %v272 = vld [vmem:[#allocation2] sm:$0x1]
    %273 = vst [vmem:[%s5] sm:$0x1] %v272
  $region29: #{_loss_impl.1} parent=0 // pred_fallthru
    _
  // Predicated region
  $region30: #{_loss_impl.1} parent=0 // pred_check
    _
  $region31: #{_loss_impl.1} parent=0 // pred_check_branch
    %275 = sbr.rel (0) target = $region33
  $region32: #{_loss_impl.1} parent=0 // pred_region
    _
  $region33: #{_loss_impl.1} parent=0 // pred_fallthru
    _
  // Predicated region
  $region34: #{_loss_impl.1} parent=0 // pred_check
    _
  $region35: #{_loss_impl.1} parent=0 // pred_check_branch
    %277 = sbr.rel (0) target = $region37
  $region36: #{_loss_impl.1} parent=0 // pred_region
    _
  $region37: #{_loss_impl.1} parent=0 // pred_fallthru
    _

</llo_original>
